<compile_context>
chip_gen: v7x
topology: tpu7x:2x2x1
jax: 0.10.0
libtpu: 0.0.40
codegen_flags: <defaults>
</compile_context>

<pallas_src>
import functools

import jax
import jax.numpy as jnp
from jax import lax
from jax.experimental import pallas as pl
from jax.experimental.pallas import tpu as pltpu


def _round_up(a: int, m: int) -> int:
    return ((a + m - 1) // m) * m


def _choose_batch_tile(B: int, batch_tile: int) -> int:
    """Batch tile: multiple of 8 sublanes, capped at `batch_tile`.

    When the batch is large enough, prefer >=2 tiles so the 'parallel' grid
    axis gives both of v7x's TensorCores work (no effect on v5e/v6e).
    """
    if B <= 8:
        return _round_up(max(B, 1), 8)
    half = _round_up(-(-B // 2), 8)                  # ~B/2, sublane aligned
    tb = min(_round_up(batch_tile, 8), half)
    return max(8, min(tb, _round_up(B, 8)))


def _ns_softmax_kernel(x_ref, pos_w_ref, neg_w_ref, neg_out_ref, pos_out_ref,
                       *, mxu_dtype):
    """One batch tile per grid step.

    x_ref       : VMEM [TB, D]      input features (pipelined per tile)
    pos_w_ref   : VMEM [TB, D]      gathered positive rows (pipelined per tile)
    neg_w_ref   : VMEM [S_pad, D]   gathered negative rows (resident, MXU dtype)
    neg_out_ref : VMEM [TB, S_pad]  negative logits (lane-dense)
    pos_out_ref : VMEM [TB, 1]      positive logits
    """
    x = x_ref[...]

    # pos_logits on the VPU/XLU (elementwise mul + cross-lane reduce).  These
    # slots are free next to the MXU matmul below, so this is near-free filler.
    pos = jnp.sum(
        x.astype(jnp.float32) * pos_w_ref[...].astype(jnp.float32),
        axis=-1, keepdims=True)
    pos_out_ref[...] = pos.astype(pos_out_ref.dtype)

    # neg_logits on the MXU: [TB, D] . [S_pad, D]^T -> [TB, S_pad], f32 accum.
    neg = lax.dot_general(
        x.astype(mxu_dtype), neg_w_ref[...],
        dimension_numbers=(((1,), (1,)), ((), ())),
        preferred_element_type=jnp.float32,
    )
    neg_out_ref[...] = neg.astype(neg_out_ref.dtype)


def ns_softmax_forward(x, true_target, neg_targets, w_t, *,
                       batch_tile=512, mxu_dtype=jnp.bfloat16):
    """Pallas wrapper. Returns (pos_logits [B], neg_logits [B, S])."""
    B, D = x.shape
    V, D2 = w_t.shape
    assert D2 == D
    (S,) = neg_targets.shape

    # Embedding row gathers happen exactly once, in the table's native dtype
    # (no O(V*D) astype copy of w_t).  HBM traffic stays O((B + S) * D).
    pos_w = jnp.take(w_t, true_target.astype(jnp.int32), axis=0)   # [B, D]
    neg_w = jnp.take(w_t, neg_targets.astype(jnp.int32), axis=0)   # [S, D]

    TB = _choose_batch_tile(B, batch_tile)
    B_pad = _round_up(B, TB)
    num_tiles = B_pad // TB
    S_pad = _round_up(S, 128)          # lane-dense MXU / output width

    # Pad batch rows with zeros (their outputs are sliced off below) and pad
    # negative rows with zeros (zero weights -> zero logits in padded columns).
    x_p = x if B_pad == B else jnp.pad(x, ((0, B_pad - B), (0, 0)))
    pos_w_p = pos_w if B_pad == B else jnp.pad(pos_w, ((0, B_pad - B), (0, 0)))
    neg_w_p = neg_w if S_pad == S else jnp.pad(neg_w, ((0, S_pad - S), (0, 0)))
    neg_w_p = neg_w_p.astype(mxu_dtype)   # resident MXU operand, MXU dtype

    kernel = functools.partial(_ns_softmax_kernel, mxu_dtype=mxu_dtype)

    neg_out, pos_out = pl.pallas_call(
        kernel,
        out_shape=(
            jax.ShapeDtypeStruct((B_pad, S_pad), jnp.float32),   # neg logits
            jax.ShapeDtypeStruct((B_pad, 1), jnp.float32),       # pos logits
        ),
        grid=(num_tiles,),
        in_specs=[
            pl.BlockSpec((TB, D), lambda t: (t, 0)),      # x tile (pipelined)
            pl.BlockSpec((TB, D), lambda t: (t, 0)),      # pos rows (pipelined)
            pl.BlockSpec((S_pad, D), lambda t: (0, 0)),   # neg rows (resident)
        ],
        out_specs=(
            pl.BlockSpec((TB, S_pad), lambda t: (t, 0)),
            pl.BlockSpec((TB, 1), lambda t: (t, 0)),
        ),
        compiler_params=pltpu.CompilerParams(
            dimension_semantics=("parallel",),
        ),
    )(x_p, pos_w_p, neg_w_p)

    pos_logits = pos_out[:B, 0]
    neg_logits = neg_out[:B, :S]
    return pos_logits, neg_logits


def init_params(key, input_size, output_size):
    """Deterministic xavier_uniform init for w_t, zeros for (unused) b."""
    fan_out, fan_in = output_size, input_size
    bound = (6.0 / (fan_in + fan_out)) ** 0.5
    w_t = jax.random.uniform(key, (output_size, input_size),
                             minval=-bound, maxval=bound, dtype=jnp.float32)
    b = jnp.zeros((input_size, 1), dtype=jnp.float32)  # unused in forward()
    return w_t, b


if __name__ == "__main__":
    # Small shapes consistent with the module's forward signature.
    batch_size = 8
    input_size = 128     # D (lane dimension)
    output_size = 512    # V (vocab / number of classes)
    n_samples = 16       # S (negative samples)

    key = jax.random.PRNGKey(0)
    k_w, k_x, k_pos, k_neg = jax.random.split(key, 4)

    w_t, b = init_params(k_w, input_size, output_size)
    x = jax.random.normal(k_x, (batch_size, input_size), dtype=jnp.float32)
    true_target = jax.random.randint(k_pos, (batch_size,), 0, output_size,
                                     dtype=jnp.int32)
    neg_targets = jax.random.randint(k_neg, (n_samples,), 0, output_size,
                                     dtype=jnp.int32)

    pos_logits, neg_logits = ns_softmax_forward(x, true_target, neg_targets, w_t)
    jax.block_until_ready((pos_logits, neg_logits))

    # Pure-JAX reference check.
    pos_w_ref = w_t[true_target]
    neg_w_ref = w_t[neg_targets]
    pos_ref = jnp.sum(x * pos_w_ref, axis=1)
    neg_ref = jnp.einsum("bd,sd->bs", x, neg_w_ref,
                         precision=lax.Precision.HIGHEST)

    assert pos_logits.shape == (batch_size,)
    assert neg_logits.shape == (batch_size, n_samples)
    # pos_logits use the f32 VPU path -> tight tolerance.
    assert jnp.allclose(pos_logits, pos_ref, atol=1e-4, rtol=1e-4)
    # neg_logits use the bf16 MXU path with f32 accumulation -> bf16 tolerance.
    assert jnp.allclose(neg_logits, neg_ref, atol=2e-2, rtol=2e-2)

    print("KERNEL_OK")
</pallas_src>

<mosaic_0001>
module attributes {stable_mosaic.version = 11 : i64} {
  func.func @_ns_softmax_kernel(%arg0: i32, %arg1: memref<8x128xf32, #tpu.memory_space<vmem>>, %arg2: memref<8x128xf32, #tpu.memory_space<vmem>>, %arg3: memref<128x128xbf16, #tpu.memory_space<vmem>>, %arg4: memref<8x128xf32, #tpu.memory_space<vmem>>, %arg5: memref<8x1xf32, #tpu.memory_space<vmem>>) attributes {dimension_semantics = [#tpu.dimension_semantics<parallel>], iteration_bounds = array<i64: 1>, scalar_prefetch = 0 : i64, scratch_operands = 0 : i64, tpu.core_type = #tpu.core_type<tc>, window_params = [{transform_indices = @transform_0, window_bounds = array<i64: 8, 128>}, {transform_indices = @transform_1, window_bounds = array<i64: 8, 128>}, {pipeline_mode = #tpu.pipeline_mode<synchronous>, transform_indices = @transform_2, window_bounds = array<i64: 128, 128>}, {transform_indices = @transform_3, window_bounds = array<i64: 8, 128>}, {transform_indices = @transform_4, window_bounds = array<i64: 8, 1>}]} {
    %c0 = arith.constant 0 : index
    %c0_0 = arith.constant 0 : index
    %0 = vector.load %arg1[%c0, %c0_0] : memref<8x128xf32, #tpu.memory_space<vmem>>, vector<8x128xf32>
    %c0_1 = arith.constant 0 : index
    %c0_2 = arith.constant 0 : index
    %1 = vector.load %arg2[%c0_1, %c0_2] : memref<8x128xf32, #tpu.memory_space<vmem>>, vector<8x128xf32>
    %2 = arith.mulf %0, %1 : vector<8x128xf32>
    %cst = arith.constant dense<0.000000e+00> : vector<8xf32>
    %3 = vector.multi_reduction <add>, %2, %cst [1] : vector<8x128xf32> to vector<8xf32>
    %4 = vector.shape_cast %3 : vector<8xf32> to vector<8x1xf32>
    %c0_3 = arith.constant 0 : index
    %c0_4 = arith.constant 0 : index
    %5 = vector.load %arg5[%c0_3, %c0_4] : memref<8x1xf32, #tpu.memory_space<vmem>>, vector<8x1xf32>
    tpu.vector_store %arg5[%c0_3, %c0_4], %4 {strides = array<i32>} : memref<8x1xf32, #tpu.memory_space<vmem>>, vector<8x1xf32>,
    %6 = arith.truncf %0 : vector<8x128xf32> to vector<8x128xbf16>
    %c0_5 = arith.constant 0 : index
    %c0_6 = arith.constant 0 : index
    %7 = vector.load %arg3[%c0_5, %c0_6] : memref<128x128xbf16, #tpu.memory_space<vmem>>, vector<128x128xbf16>
    %cst_7 = arith.constant dense<0.000000e+00> : vector<8x128xf32>
    %8 = tpu.matmul %6, %7, %cst_7 {dimension_numbers = #tpu.dot_dimension_numbers<[1], [1], [0], [0], [0, 0, 1, 0], [], []>} : vector<8x128xbf16>, vector<128x128xbf16>, vector<8x128xf32> -> vector<8x128xf32>
    %c0_8 = arith.constant 0 : index
    %c0_9 = arith.constant 0 : index
    %9 = vector.load %arg4[%c0_8, %c0_9] : memref<8x128xf32, #tpu.memory_space<vmem>>, vector<8x128xf32>
    tpu.vector_store %arg4[%c0_8, %c0_9], %8 {strides = array<i32>} : memref<8x128xf32, #tpu.memory_space<vmem>>, vector<8x128xf32>,
    return
  }
  func.func @transform_0(%arg0: i32) -> (i32, i32) {
    %c0_i32 = arith.constant 0 : i32
    %c0_i32_0 = arith.constant 0 : i32
    return %arg0, %c0_i32 : i32, i32
  }
  func.func @transform_1(%arg0: i32) -> (i32, i32) {
    %c0_i32 = arith.constant 0 : i32
    %c0_i32_0 = arith.constant 0 : i32
    return %arg0, %c0_i32 : i32, i32
  }
  func.func @transform_2(%arg0: i32) -> (i32, i32) {
    %c0_i32 = arith.constant 0 : i32
    %c0_i32_0 = arith.constant 0 : i32
    %c0_i32_1 = arith.constant 0 : i32
    return %c0_i32, %c0_i32_0 : i32, i32
  }
  func.func @transform_3(%arg0: i32) -> (i32, i32) {
    %c0_i32 = arith.constant 0 : i32
    %c0_i32_0 = arith.constant 0 : i32
    return %arg0, %c0_i32 : i32, i32
  }
  func.func @transform_4(%arg0: i32) -> (i32, i32) {
    %c0_i32 = arith.constant 0 : i32
    %c0_i32_0 = arith.constant 0 : i32
    return %arg0, %c0_i32 : i32, i32
  }
}

</mosaic_0001>

<llo_original>
// kernel: tpu_custom_call.1
$region0: #{tpu_custom_call.1}
  #allocation0 [shape = 'u32[]', space=smem, size = 0x4, offset = 0x4, fixed_abs, tag = 'smem constant byte address 0x4 - core index']
  #allocation1 [shape = 'u32[144,128]{1,0:T(1,128)}', space=vmem, size = 0x12000, scoped, tag = 'internal scratch']
  %s0 = inlined_call_operand.hbm [shape: f32[8,128], index: 0, kind: input, shape index: {}]
  %s1 = inlined_call_operand.hbm [shape: f32[8,128], index: 1, kind: input, shape index: {}]
  %s2 = inlined_call_operand.hbm [shape: bf16[128,128], index: 2, kind: input, shape index: {}]
  %s3 = inlined_call_operand.hbm [shape: f32[8,128], index: 3, kind: output, shape index: {0}]
  %s4 = inlined_call_operand.vmem [shape: f32[8,1], index: 4, kind: output, shape index: {1}]
  %5 = xla_tuple %s3, %s4
  %s6 = sld [smem:[#allocation0]]
  $region42: #{tpu_custom_call.1} parent=0
    _
  %s8 = ssub.s32 1, %s6
  %s9 = scalar_select 0, %s8, %s6
  $region1: #{tpu_custom_call.1} parent=0
    #allocation2 [shape = 'u8[4096]{0}', space=vmem, size = 0x1000, scoped, tag = 'input window, operand 0, single buffered']
    #allocation3 [shape = 's32[1]{0}', space=sflag, size = 0x4, scoped, tag = 'scoped memory for tpu_custom_call.1']
    #allocation4 [shape = 's32[1]{0}', space=sflag, size = 0x4, scoped, tag = 'scoped memory for tpu_custom_call.1']
    #allocation5 [shape = 'u8[4096]{0}', space=vmem, size = 0x1000, scoped, tag = 'input window, operand 1, single buffered']
    #allocation6 [shape = 's32[1]{0}', space=sflag, size = 0x4, scoped, tag = 'scoped memory for tpu_custom_call.1']
    #allocation7 [shape = 'u8[32768]{0}', space=vmem, size = 0x8000, scoped, tag = 'input window, operand 2, single buffered']
    #allocation8 [shape = 'u8[4096]{0}', space=vmem, size = 0x1000, scoped, tag = 'output window, operand 0, single buffered']
    %10 = vsyncpa [#allocation3], 0
    %11 = vsyncpa [#allocation6], 0
    %12 = vsyncpa [#allocation4], 0
    // Predicated region
    $region2: #{tpu_custom_call.1} parent=1 // pred_check
      _
    $region3: #{tpu_custom_call.1} parent=1 // pred_check_branch
      %14 = sbr.rel (0) target = $region5
    $region4: #{tpu_custom_call.1} parent=1 // pred_region
      %s16 = ssub.s32 128, 128
      %17 = vsyncadd [#allocation3], %s16
      %s19 = sshll.u32 [#allocation2], 4
      %s20 = int_to_ptr.vmem [resolvable:$true] %s19
      %22 = dma.hbm_to_vmem [thread:$0]  %s0, 128, %s20, [#allocation3]
    $region5: #{tpu_custom_call.1} parent=1 // pred_fallthru
      _
    // Predicated region
    $region6: #{tpu_custom_call.1} parent=1 // pred_check
      _
    $region7: #{tpu_custom_call.1} parent=1 // pred_check_branch
      %24 = sbr.rel (0) target = $region9
    $region8: #{tpu_custom_call.1} parent=1 // pred_region
      %s26 = ssub.s32 128, 128
      %27 = vsyncadd [#allocation6], %s26
      %s29 = sshll.u32 [#allocation5], 4
      %s30 = int_to_ptr.vmem [resolvable:$true] %s29
      %32 = dma.hbm_to_vmem [thread:$0]  %s1, 128, %s30, [#allocation6]
    $region9: #{tpu_custom_call.1} parent=1 // pred_fallthru
      _
    // Predicated region
    $region10: #{tpu_custom_call.1} parent=1 // pred_check
      _
    $region11: #{tpu_custom_call.1} parent=1 // pred_check_branch
      %34 = sbr.rel (0) target = $region13
    $region12: #{tpu_custom_call.1} parent=1 // pred_region
      %s36 = ssub.s32 1024, 1024
      %37 = vsyncadd [#allocation6], %s36
      %s38 = sshll.u32 [#allocation7], 4
      %s39 = int_to_ptr.vmem [resolvable:$true] %s38
      %44 = dma.hbm_to_vmem [thread:$0]  %s2, 1024, %s39, [#allocation6], 64, 64, 4
    $region13: #{tpu_custom_call.1} parent=1 // pred_fallthru
      _
    // Predicated region
    $region14: #{tpu_custom_call.1} parent=1 // pred_check
      _
    $region15: #{tpu_custom_call.1} parent=1 // pred_check_branch
      %46 = sbr.rel (0) target = $region17
    $region16: #{tpu_custom_call.1} parent=1 // pred_region
      %47 = dma.done [#allocation3], 128
    $region17: #{tpu_custom_call.1} parent=1 // pred_fallthru
      _
    // Predicated region
    $region18: #{tpu_custom_call.1} parent=1 // pred_check
      _
    $region19: #{tpu_custom_call.1} parent=1 // pred_check_branch
      %49 = sbr.rel (0) target = $region21
    $region20: #{tpu_custom_call.1} parent=1 // pred_region
      %50 = dma.done [#allocation6], 128
    $region21: #{tpu_custom_call.1} parent=1 // pred_fallthru
      _
    // Predicated region
    $region22: #{tpu_custom_call.1} parent=1 // pred_check
      _
    $region23: #{tpu_custom_call.1} parent=1 // pred_check_branch
      %52 = sbr.rel (0) target = $region25
    $region24: #{tpu_custom_call.1} parent=1 // pred_region
      %53 = dma.done [#allocation6], 1024
    $region25: #{tpu_custom_call.1} parent=1 // pred_fallthru
      _
    %v55 = vld [vmem:[#allocation2] sm:$0xff]
    %v56 = vld [vmem:[#allocation5] sm:$0xff]
    %v57 = vmul.f32 %v55, %v56
    %58 = vadd.xlane.f32.xlu0 %v57
    %v59 = vpop.xlane.xlu0 %58
    %vm60 = vcmask 7168
    %61 = vst.msk [vmem:[%s4] sm:$0xff] %vm60, %v59
    %v62 = vpack.c.bf16 %v55, %v55
    %v63 = vld [vmem:[#allocation7] sm:$0xf]
    %v64 = vld [vmem:[#allocation7 + $0x4] sm:$0xf]
    %v65 = vld [vmem:[#allocation7 + $0x8] sm:$0xf]
    %v66 = vld [vmem:[#allocation7 + $0xc] sm:$0xf]
    %v67 = vld [vmem:[#allocation7 + $0x10] sm:$0xf]
    %v68 = vld [vmem:[#allocation7 + $0x14] sm:$0xf]
    %v69 = vld [vmem:[#allocation7 + $0x18] sm:$0xf]
    %v70 = vld [vmem:[#allocation7 + $0x1c] sm:$0xf]
    %v71 = vld [vmem:[#allocation7 + $0x20] sm:$0xf]
    %v72 = vld [vmem:[#allocation7 + $0x24] sm:$0xf]
    %v73 = vld [vmem:[#allocation7 + $0x28] sm:$0xf]
    %v74 = vld [vmem:[#allocation7 + $0x2c] sm:$0xf]
    %v75 = vld [vmem:[#allocation7 + $0x30] sm:$0xf]
    %v76 = vld [vmem:[#allocation7 + $0x34] sm:$0xf]
    %v77 = vld [vmem:[#allocation7 + $0x38] sm:$0xf]
    %v78 = vld [vmem:[#allocation7 + $0x3c] sm:$0xf]
    %v95 = vunpack.c.l.b16 %v63
    %v96 = vunpack.c.l.b16 %v64
    %v97 = vunpack.c.l.b16 %v65
    %v98 = vunpack.c.l.b16 %v66
    %v99 = vunpack.c.l.b16 %v67
    %v100 = vunpack.c.l.b16 %v68
    %v101 = vunpack.c.l.b16 %v69
    %v102 = vunpack.c.l.b16 %v70
    %v103 = vunpack.c.l.b16 %v71
    %v104 = vunpack.c.l.b16 %v72
    %v105 = vunpack.c.l.b16 %v73
    %v106 = vunpack.c.l.b16 %v74
    %v107 = vunpack.c.l.b16 %v75
    %v108 = vunpack.c.l.b16 %v76
    %v109 = vunpack.c.l.b16 %v77
    %v110 = vunpack.c.l.b16 %v78
    %v111 = vpack.c.b16 %v96, %v95
    %v112 = vpack.c.b16 %v98, %v97
    %v113 = vpack.c.b16 %v100, %v99
    %v114 = vpack.c.b16 %v102, %v101
    %v115 = vpack.c.b16 %v104, %v103
    %v116 = vpack.c.b16 %v106, %v105
    %v117 = vpack.c.b16 %v108, %v107
    %v118 = vpack.c.b16 %v110, %v109
    %127 = vmatprep.subr.bf16.mxu0 0
    %128 = vmatpush1.bf16.xpose.msra.mxu0 %v111
    %129 = vmatprep.subr.bf16.mxu0 0
    %130 = vmatpush1.bf16.xpose.msra.mxu0 %v112
    %131 = vmatprep.subr.bf16.mxu0 0
    %132 = vmatpush1.bf16.xpose.msra.mxu0 %v113
    %133 = vmatprep.subr.bf16.mxu0 0
    %134 = vmatpush1.bf16.xpose.msra.mxu0 %v114
    %135 = vmatprep.subr.bf16.mxu0 0
    %136 = vmatpush1.bf16.xpose.msra.mxu0 %v115
    %137 = vmatprep.subr.bf16.mxu0 0
    %138 = vmatpush1.bf16.xpose.msra.mxu0 %v116
    %139 = vmatprep.subr.bf16.mxu0 0
    %140 = vmatpush1.bf16.xpose.msra.mxu0 %v117
    %141 = vmatprep.subr.bf16.mxu0 0
    %142 = vmatpush1.bf16.xpose.msra.mxu0 %v118
    %143 = vmatprep.subr.bf16.mxu0 0
    %144 = vmatpush1.bf16.xpose.msra.mxu0 0
    %145 = vmatprep.subr.bf16.mxu0 0
    %146 = vmatpush1.bf16.xpose.msra.mxu0 0
    %147 = vmatprep.subr.bf16.mxu0 0
    %148 = vmatpush1.bf16.xpose.msra.mxu0 0
    %149 = vmatprep.subr.bf16.mxu0 0
    %150 = vmatpush1.bf16.xpose.msra.mxu0 0
    %151 = vmatprep.subr.bf16.mxu0 0
    %152 = vmatpush1.bf16.xpose.msra.mxu0 0
    %153 = vmatprep.subr.bf16.mxu0 0
    %154 = vmatpush1.bf16.xpose.msra.mxu0 0
    %155 = vmatprep.subr.bf16.mxu0 0
    %156 = vmatpush1.bf16.xpose.msra.mxu0 0
    %157 = vmatprep.subr.bf16.mxu0 0
    %158 = vmatpush1.bf16.xpose.msra.mxu0 0
    %159 = vmatprep.mubr.bf16.mxu0 0
    %160 = vmatmul.mubr.bf16.gmra.mrb[0].mxu0 %v62
    %v161 = vpop.f32.mrb[0].mxu0
    %v162 = vadd.f32 0.0, %v161
    %v163 = vpop.f32.mrb[0].mxu0
    %v164 = vpop.f32.mrb[0].mxu0
    %v165 = vpop.f32.mrb[0].mxu0
    %166 = vdwg.mxu0
    %167 = vst [vmem:[#allocation8] sm:$0xff] %v162
    // Predicated region
    $region26: #{tpu_custom_call.1} parent=1 // pred_check
      _
    $region27: #{tpu_custom_call.1} parent=1 // pred_check_branch
      %169 = sbr.rel (0) target = $region29
    $region28: #{tpu_custom_call.1} parent=1 // pred_region
      %s171 = ssub.s32 128, 128
      %172 = vsyncadd [#allocation4], %s171
      %s174 = sshll.u32 [#allocation8], 4
      %s175 = int_to_ptr.vmem [resolvable:$true] %s174
      %177 = dma.vmem_to_hbm [thread:$0]  %s175, 128, %s3, [#allocation4]
    $region29: #{tpu_custom_call.1} parent=1 // pred_fallthru
      _
    // Predicated region
    $region30: #{tpu_custom_call.1} parent=1 // pred_check
      _
    $region31: #{tpu_custom_call.1} parent=1 // pred_check_branch
      %179 = sbr.rel (0) target = $region33
    $region32: #{tpu_custom_call.1} parent=1 // pred_region
      _
    $region33: #{tpu_custom_call.1} parent=1 // pred_fallthru
      _
    // Predicated region
    $region34: #{tpu_custom_call.1} parent=1 // pred_check
      _
    $region35: #{tpu_custom_call.1} parent=1 // pred_check_branch
      %181 = sbr.rel (0) target = $region37
    $region36: #{tpu_custom_call.1} parent=1 // pred_region
      %182 = dma.done [#allocation4], 128
    $region37: #{tpu_custom_call.1} parent=1 // pred_fallthru
      _
    // Predicated region
    $region38: #{tpu_custom_call.1} parent=1 // pred_check
      _
    $region39: #{tpu_custom_call.1} parent=1 // pred_check_branch
      %184 = sbr.rel (0) target = $region41
    $region40: #{tpu_custom_call.1} parent=1 // pred_region
      _
    $region41: #{tpu_custom_call.1} parent=1 // pred_fallthru
      _
    %185 = vsyncpa [#allocation3], 1
    %186 = vsyncpa [#allocation6], 1
    %187 = vsyncpa [#allocation4], 1

</llo_original>
